<compile_context>
chip_gen: v5e
topology: v5e:2x2
jax: 0.10.0
libtpu: 0.0.40
codegen_flags: <defaults>
</compile_context>

<pallas_src>
import functools

import jax
import jax.numpy as jnp
from jax.experimental import pallas as pl
from jax.experimental.pallas import tpu as pltpu


def _lc_kernel_flat(x_ref, o_ref, *, W):
    # x_ref: (tile_nc, 3*W) -- only the first 3 H-rows, lane-flat.
    # o_ref: (tile_nc, 2*W) -- lane-dense output.
    x = x_ref[...]
    o_ref[:, 0:W] = x[:, 0:W] - x[:, 2 * W:3 * W]   # i = row0 - row2
    o_ref[:, W:2 * W] = x[:, W:2 * W]               # q = row1


def _lc_kernel_rows(x_ref, o_ref, *, W):
    # x_ref: (tile_nc, h_blk, W) with h_blk >= 3; o_ref: (tile_nc, 2*W).
    x = x_ref[:, 0:3, :]
    o_ref[:, 0:W] = x[:, 0, :] - x[:, 2, :]          # i = row0 - row2
    o_ref[:, W:2 * W] = x[:, 1, :]                   # q = row1


def _pick_tile_nc(NC, in_row_elems, out_row_elems, itemsize, sub_q,
                  target_bytes=12 << 20):
    """Rows per block: multiple of the sublane quantum, double-buffered
    input+output under `target_bytes`, and (when possible) >= 2 grid steps."""
    if NC <= sub_q:
        return NC
    per_row = 2 * (in_row_elems + out_row_elems) * itemsize  # 2x double-buffer
    vmem_cap = max(sub_q, (target_bytes // per_row) // sub_q * sub_q)
    # Cap at ~half the rows so v7x's two TensorCores both get grid steps.
    half = max(sub_q, ((NC + 1) // 2) // sub_q * sub_q)
    return int(min(vmem_cap, half))


def lc_forward(x):
    """x: (N, C, H, W) with H >= 3. Returns (N, C, 2, W)."""
    N, C, H, W = x.shape
    assert H >= 3, "LC requires at least 3 rows along the H axis"

    itemsize = jnp.dtype(x.dtype).itemsize
    sub_q = max(8, 32 // itemsize)        # sublane quantum for this dtype
    NC = N * C

    if W % 128 == 0:
        # Fast path: lane-flat view, read exactly 3*W lanes per (n, c) row.
        x_flat = x.reshape(NC, H * W)     # free for contiguous NCHW
        tile_nc = _pick_tile_nc(NC, 3 * W, 2 * W, itemsize, sub_q)
        grid = (pl.cdiv(NC, tile_nc),)
        out_flat = pl.pallas_call(
            functools.partial(_lc_kernel_flat, W=W),
            out_shape=jax.ShapeDtypeStruct((NC, 2 * W), x.dtype),
            grid_spec=pltpu.PrefetchScalarGridSpec(
                num_scalar_prefetch=0,
                grid=grid,
                in_specs=[
                    # Only lanes [0, 3*W) (H-rows 0..2) are ever fetched.
                    pl.BlockSpec((tile_nc, 3 * W), lambda i: (i, 0)),
                ],
                out_specs=pl.BlockSpec((tile_nc, 2 * W), lambda i: (i, 0)),
            ),
            compiler_params=pltpu.CompilerParams(
                dimension_semantics=("parallel",),
            ),
        )(x_flat)
    else:
        # Fallback (W not a multiple of 128): 3-D blocks fetching only the
        # first sublane quantum of H rows.
        # TODO(synk): consider pipeline_mode=pl.Buffered(3) here on v6e when
        # the per-step DMA is small; omitted to keep lowering maximally safe.
        h_blk = sub_q if H >= sub_q else H
        x_rows = x.reshape(NC, H, W)
        tile_nc = _pick_tile_nc(NC, h_blk * W, 2 * W, itemsize, sub_q)
        grid = (pl.cdiv(NC, tile_nc),)
        out_flat = pl.pallas_call(
            functools.partial(_lc_kernel_rows, W=W),
            out_shape=jax.ShapeDtypeStruct((NC, 2 * W), x.dtype),
            grid_spec=pltpu.PrefetchScalarGridSpec(
                num_scalar_prefetch=0,
                grid=grid,
                in_specs=[
                    # Only H-block 0 (rows 0..h_blk-1) is ever read.
                    pl.BlockSpec((tile_nc, h_blk, W), lambda i: (i, 0, 0)),
                ],
                out_specs=pl.BlockSpec((tile_nc, 2 * W), lambda i: (i, 0)),
            ),
            compiler_params=pltpu.CompilerParams(
                dimension_semantics=("parallel",),
            ),
        )(x_rows)

    # Free, contiguity-preserving reshape back to the NCHW-style output.
    return out_flat.reshape(N, C, 2, W)


def lc_reference(x):
    i = x[:, :, 0:1, :] - x[:, :, 2:3, :]
    q = x[:, :, 1:2, :]
    return jnp.concatenate([i, q], axis=2)


if __name__ == "__main__":
    # Case 1: small NCHW input (batch=2, channels=4, H=16, W=16) -> fallback
    # (row-block) path, since W is not a multiple of 128.
    x1 = jax.random.normal(jax.random.PRNGKey(0), (2, 4, 16, 16),
                           dtype=jnp.float32)
    out1 = lc_forward(x1)
    jax.block_until_ready(out1)
    ref1 = lc_reference(x1)
    assert out1.shape == (2, 4, 2, 16)
    assert jnp.allclose(out1, ref1, atol=1e-6, rtol=1e-6)

    # Case 2: W = 128 (lane-dense), H not a multiple of 8 -> flat fast path
    # with a 2-step parallel grid.
    x2 = jax.random.normal(jax.random.PRNGKey(1), (2, 8, 20, 128),
                           dtype=jnp.float32)
    out2 = lc_forward(x2)
    jax.block_until_ready(out2)
    ref2 = lc_reference(x2)
    assert out2.shape == (2, 8, 2, 128)
    assert jnp.allclose(out2, ref2, atol=1e-6, rtol=1e-6)

    print("KERNEL_OK")
</pallas_src>

<mosaic_0001>
module attributes {stable_mosaic.version = 11 : i64} {
  func.func @_lc_kernel_rows(%arg0: i32, %arg1: memref<8x8x16xf32, #tpu.memory_space<vmem>>, %arg2: memref<8x32xf32, #tpu.memory_space<vmem>>) attributes {dimension_semantics = [#tpu.dimension_semantics<parallel>], iteration_bounds = array<i64: 1>, scalar_prefetch = 0 : i64, scratch_operands = 0 : i64, tpu.core_type = #tpu.core_type<tc>, window_params = [{transform_indices = @transform_0, window_bounds = array<i64: 8, 8, 16>}, {transform_indices = @transform_1, window_bounds = array<i64: 8, 32>}]} {
    %c0 = arith.constant 0 : index
    %c0_0 = arith.constant 0 : index
    %c0_1 = arith.constant 0 : index
    %0 = vector.load %arg1[%c0, %c0_0, %c0_1] : memref<8x8x16xf32, #tpu.memory_space<vmem>>, vector<8x3x16xf32>
    %1 = vector.extract_strided_slice %0 {offsets = [0, 0, 0], sizes = [8, 1, 16], strides = [1, 1, 1]} : vector<8x3x16xf32> to vector<8x1x16xf32>
    %2 = vector.shape_cast %1 : vector<8x1x16xf32> to vector<8x16xf32>
    %3 = vector.extract_strided_slice %0 {offsets = [0, 2, 0], sizes = [8, 1, 16], strides = [1, 1, 1]} : vector<8x3x16xf32> to vector<8x1x16xf32>
    %4 = vector.shape_cast %3 : vector<8x1x16xf32> to vector<8x16xf32>
    %5 = arith.subf %2, %4 : vector<8x16xf32>
    %c0_2 = arith.constant 0 : index
    %c0_3 = arith.constant 0 : index
    %6 = vector.load %arg2[%c0_2, %c0_3] : memref<8x32xf32, #tpu.memory_space<vmem>>, vector<8x16xf32>
    tpu.vector_store %arg2[%c0_2, %c0_3], %5 {strides = array<i32>} : memref<8x32xf32, #tpu.memory_space<vmem>>, vector<8x16xf32>,
    %7 = vector.extract_strided_slice %0 {offsets = [0, 1, 0], sizes = [8, 1, 16], strides = [1, 1, 1]} : vector<8x3x16xf32> to vector<8x1x16xf32>
    %8 = vector.shape_cast %7 : vector<8x1x16xf32> to vector<8x16xf32>
    %c0_4 = arith.constant 0 : index
    %c16 = arith.constant 16 : index
    %9 = vector.load %arg2[%c0_4, %c16] : memref<8x32xf32, #tpu.memory_space<vmem>>, vector<8x16xf32>
    tpu.vector_store %arg2[%c0_4, %c16], %8 {strides = array<i32>} : memref<8x32xf32, #tpu.memory_space<vmem>>, vector<8x16xf32>,
    return
  }
  func.func @transform_0(%arg0: i32) -> (i32, i32, i32) {
    %c0_i32 = arith.constant 0 : i32
    %c0_i32_0 = arith.constant 0 : i32
    %c0_i32_1 = arith.constant 0 : i32
    return %arg0, %c0_i32, %c0_i32_0 : i32, i32, i32
  }
  func.func @transform_1(%arg0: i32) -> (i32, i32) {
    %c0_i32 = arith.constant 0 : i32
    %c0_i32_0 = arith.constant 0 : i32
    return %arg0, %c0_i32 : i32, i32
  }
}

</mosaic_0001>

<llo_original>
// kernel: tpu_custom_call.1
$region0: #{tpu_custom_call.1}
  #allocation0 [shape = 'u32[]', space=smem, size = 0x4, offset = 0x4, fixed_abs, tag = 'smem constant byte address 0x4 - core index']
  #allocation1 [shape = 'u32[72,128]{1,0:T(1,128)}', space=vmem, size = 0x9000, scoped, tag = 'internal scratch']
  %s0 = inlined_call_operand.hbm [shape: f32[8,16,16], index: 0, kind: input, shape index: {}]
  %s1 = inlined_call_operand.hbm [shape: f32[8,32], index: 1, kind: output, shape index: {}]
  %s2 = sld [smem:[#allocation0]]
  $region18: #{tpu_custom_call.1} parent=0
    _
  %s4 = ssub.s32 1, %s2
  %s5 = scalar_select 0, %s4, %s2
  $region1: #{tpu_custom_call.1} parent=0
    #allocation2 [shape = 'u8[32768]{0}', space=vmem, size = 0x8000, scoped, tag = 'input window, operand 0, single buffered']
    #allocation3 [shape = 's32[1]{0}', space=sflag, size = 0x4, scoped, tag = 'scoped memory for tpu_custom_call.1']
    #allocation4 [shape = 's32[1]{0}', space=sflag, size = 0x4, scoped, tag = 'scoped memory for tpu_custom_call.1']
    #allocation5 [shape = 'u8[4096]{0}', space=vmem, size = 0x1000, scoped, tag = 'output window, operand 0, single buffered']
    %6 = vsyncpa [#allocation3], 0
    %7 = vsyncpa [#allocation4], 0
    // Predicated region
    $region2: #{tpu_custom_call.1} parent=1 // pred_check
      _
    $region3: #{tpu_custom_call.1} parent=1 // pred_check_branch
      %9 = sbr.rel (0) target = $region5
    $region4: #{tpu_custom_call.1} parent=1 // pred_region
      %11 = vsyncadd [#allocation3], 0
      %s12 = sshll.u32 %s0, 4
      %s13 = int_to_ptr.hbm [resolvable:$true] %s12
      %s14 = sshll.u32 [#allocation2], 4
      %s15 = int_to_ptr.vmem [resolvable:$true] %s14
      %20 = dma.hbm_to_vmem [thread:$0]  %s13, 1024, %s15, [#allocation3], 256, 128, 8
    $region5: #{tpu_custom_call.1} parent=1 // pred_fallthru
      _
    // Predicated region
    $region6: #{tpu_custom_call.1} parent=1 // pred_check
      _
    $region7: #{tpu_custom_call.1} parent=1 // pred_check_branch
      %22 = sbr.rel (0) target = $region9
    $region8: #{tpu_custom_call.1} parent=1 // pred_region
      %24 = dma.done [#allocation3], 1024
    $region9: #{tpu_custom_call.1} parent=1 // pred_fallthru
      _
    %v25 = vld [vmem:[#allocation2] sm:$0x7]
    %v26 = vld [vmem:[#allocation2 + $0x8] sm:$0x7]
    %v27 = vld [vmem:[#allocation2 + $0x10] sm:$0x7]
    %v28 = vld [vmem:[#allocation2 + $0x18] sm:$0x7]
    %v29 = vld [vmem:[#allocation2 + $0x20] sm:$0x7]
    %v30 = vld [vmem:[#allocation2 + $0x28] sm:$0x7]
    %v31 = vld [vmem:[#allocation2 + $0x30] sm:$0x7]
    %v32 = vld [vmem:[#allocation2 + $0x38] sm:$0x7]
    %v41 = vrot.slane %v25, 2
    %v42 = vrot.slane %v26, 2
    %v43 = vrot.slane %v27, 2
    %v44 = vrot.slane %v28, 2
    %v45 = vrot.slane %v29, 2
    %v46 = vrot.slane %v30, 2
    %v47 = vrot.slane %v31, 2
    %v48 = vrot.slane %v32, 2
    %v57 = vsub.f32 %v25, %v41
    %v58 = vsub.f32 %v26, %v42
    %v59 = vsub.f32 %v27, %v43
    %v60 = vsub.f32 %v28, %v44
    %v61 = vsub.f32 %v29, %v45
    %v62 = vsub.f32 %v30, %v46
    %v63 = vsub.f32 %v31, %v47
    %v64 = vsub.f32 %v32, %v48
    %v73 = vrot.slane %v58, 7
    %vm74 = vcmask 1041409
    %v75 = vsel %vm74, %v73, %v57
    %v76 = vrot.slane %v59, 6
    %vm77 = vcmask 1042434
    %v78 = vsel %vm77, %v76, %v75
    %v79 = vrot.slane %v60, 5
    %vm80 = vcmask 1043459
    %v81 = vsel %vm80, %v79, %v78
    %v82 = vrot.slane %v61, 4
    %vm83 = vcmask 1044484
    %v84 = vsel %vm83, %v82, %v81
    %v85 = vrot.slane %v62, 3
    %vm86 = vcmask 1045509
    %v87 = vsel %vm86, %v85, %v84
    %v88 = vrot.slane %v63, 2
    %vm89 = vcmask 1046534
    %v90 = vsel %vm89, %v88, %v87
    %v91 = vrot.slane %v64, 1
    %vm92 = vcmask 1047559
    %v93 = vsel %vm92, %v91, %v90
    %vm95 = vcmask 130048
    %96 = vst.msk [vmem:[#allocation5] sm:$0xff] %vm95, %v93
    %v97 = vrot.slane %v26, 7
    %v98 = vsel %vm77, %v97, %v25
    %v99 = vrot.slane %v27, 6
    %v100 = vsel %vm80, %v99, %v98
    %v101 = vrot.slane %v28, 5
    %v102 = vsel %vm83, %v101, %v100
    %v103 = vrot.slane %v29, 4
    %v104 = vsel %vm86, %v103, %v102
    %v105 = vrot.slane %v30, 3
    %v106 = vsel %vm89, %v105, %v104
    %v107 = vsel %vm92, %v47, %v106
    %v108 = vrot.slane %v32, 1
    %109 = vrot.lane.b32.xlu0 %v107, 16
    %v110 = vpop.permute.xlu0 %109
    %111 = vrot.lane.b32.xlu0 %v108, 16
    %v112 = vpop.permute.xlu0 %111
    %vm115 = vcmask 261249
    %116 = vst.msk [vmem:[#allocation5 - $0x1] sm:$0xfe] %vm115, %v110
    %vm117 = vcmask 254080
    %118 = vst.msk [vmem:[#allocation5 + $0x7] sm:$0x1] %vm117, %v112
    // Predicated region
    $region10: #{tpu_custom_call.1} parent=1 // pred_check
      _
    $region11: #{tpu_custom_call.1} parent=1 // pred_check_branch
      %120 = sbr.rel (0) target = $region13
    $region12: #{tpu_custom_call.1} parent=1 // pred_region
      %122 = vsyncadd [#allocation4], 0
      %s124 = sshll.u32 [#allocation5], 4
      %s125 = int_to_ptr.vmem [resolvable:$true] %s124
      %s126 = sshll.u32 %s1, 4
      %s127 = int_to_ptr.hbm [resolvable:$true] %s126
      %129 = dma.vmem_to_hbm [thread:$0]  %s125, 128, %s127, [#allocation4]
    $region13: #{tpu_custom_call.1} parent=1 // pred_fallthru
      _
    // Predicated region
    $region14: #{tpu_custom_call.1} parent=1 // pred_check
      _
    $region15: #{tpu_custom_call.1} parent=1 // pred_check_branch
      %131 = sbr.rel (0) target = $region17
    $region16: #{tpu_custom_call.1} parent=1 // pred_region
      %133 = dma.done [#allocation4], 128
    $region17: #{tpu_custom_call.1} parent=1 // pred_fallthru
      _
    %134 = vsyncpa [#allocation3], 1
    %135 = vsyncpa [#allocation4], 1

</llo_original>
